<compile_context>
chip_gen: v7x
topology: tpu7x:2x2x1
jax: 0.10.0
libtpu: 0.0.40
codegen_flags: <defaults>
</compile_context>

<pallas_src>
import jax
import jax.numpy as jnp
from jax.experimental import pallas as pl
from jax.experimental.pallas import tpu as pltpu

KERNEL_SIZES = (3, 4, 5)


def _make_textcnn_kernel(tb, t_pad, f_pad):
    """Fused conv + ReLU + max-pool + FC + softmax for one TB-row block."""

    def kernel(patch_ref, wconv_ref, bconv_ref, mask_ref, fcw_ref, fcb_ref,
               out_ref):
        # One block-level matmul: (TB*T_pad, kmax*D) x (kmax*D, F_pad) -> f32.
        conv = jnp.dot(patch_ref[...], wconv_ref[...],
                       preferred_element_type=jnp.float32)
        conv = jnp.maximum(conv + bconv_ref[...], 0.0)        # bias + ReLU (f32)
        # Zero out invalid time positions / padded filters.  Safe before the
        # max because ReLU output is non-negative.
        conv = conv * mask_ref[...]
        pooled = jnp.max(conv.reshape(tb, t_pad, f_pad), axis=1)   # (TB, F_pad)

        # FC: padded filter rows of fcw are zero, padded classes carry -1e30.
        logits = jnp.dot(pooled.astype(fcw_ref.dtype), fcw_ref[...],
                         preferred_element_type=jnp.float32)
        logits = logits + fcb_ref[...]
        m = jnp.max(logits, axis=1, keepdims=True)
        e = jnp.exp(logits - m)
        denom = jnp.sum(e, axis=1, keepdims=True)
        out_ref[...] = (e * pl.reciprocal(denom, approx=True)).astype(
            out_ref.dtype)

    return kernel


def _pick_tb(batch, t_pad, k_dim, block_batch):
    """Rows per grid step: multiple of 8, bounded by a conservative VMEM budget."""
    tb = max(8, ((min(block_batch, batch) + 7) // 8) * 8)
    budget = 8 * 1024 * 1024            # bytes for the double-buffered patches block
    while tb > 8 and 2 * tb * t_pad * k_dim * 2 > budget:
        tb = max(8, ((tb // 2 + 7) // 8) * 8)
    return tb


def textcnn_forward(emb, conv_ws, conv_bs, fc_w, fc_b, *,
                    kernel_sizes=KERNEL_SIZES, block_batch=8,
                    compute_dtype=jnp.bfloat16):
    """emb: (B,S,D) f32. conv_ws[g]: (k_g,D,F). conv_bs[g]: (1,F).
    fc_w: (3F,C) (PyTorch fc.weight transposed). fc_b: (1,C)."""
    B, S, D = emb.shape
    F = conv_ws[0].shape[-1]
    F_total = len(kernel_sizes) * F
    C = fc_w.shape[-1]
    kmin, kmax = min(kernel_sizes), max(kernel_sizes)

    t_out = S - kmin + 1                              # valid time positions (widest group)
    T_pad = ((t_out + 15) // 16) * 16                 # sublane-friendly (bf16 packs by 16)
    K = kmax * D                                      # fused contraction dim
    F_pad = max(128, ((F_total + 127) // 128) * 128)  # lane-dense filter dim
    C_pad = max(128, ((C + 127) // 128) * 128)        # lane-dense class dim

    TB = _pick_tb(B, T_pad, K, block_batch)           # rows per grid step
    B_pad = ((B + TB - 1) // TB) * TB

    # ---- wrapper-side im2col (XLA glue): (B_pad*T_pad, kmax*D) bf16 slab ----
    emb_ext = jnp.pad(emb, ((0, B_pad - B), (0, kmax - kmin), (0, 0)))
    patches = jnp.concatenate(
        [emb_ext[:, i:i + t_out, :] for i in range(kmax)], axis=2)   # (B_pad, t_out, K)
    patches = jnp.pad(patches, ((0, 0), (0, T_pad - t_out), (0, 0)))
    patches = patches.reshape(B_pad * T_pad, K).astype(compute_dtype)

    # ---- fused conv weight: taps folded into K, filter groups stacked on N ----
    w_flat = jnp.zeros((K, F_pad), jnp.float32)
    for g, (k, w) in enumerate(zip(kernel_sizes, conv_ws)):
        w_flat = w_flat.at[:k * D, g * F:(g + 1) * F].set(w.reshape(k * D, F))
    w_flat = w_flat.astype(compute_dtype)
    b_flat = jnp.zeros((1, F_pad), jnp.float32)
    for g, bias in enumerate(conv_bs):
        b_flat = b_flat.at[:, g * F:(g + 1) * F].set(bias)

    # ---- validity mask, precomputed once (same block every grid step) ----
    t_idx = jnp.arange(T_pad)[:, None]
    mask = jnp.zeros((T_pad, F_pad), jnp.float32)
    for g, k in enumerate(kernel_sizes):
        col = (t_idx < (S - k + 1)).astype(jnp.float32)
        mask = mask.at[:, g * F:(g + 1) * F].set(jnp.broadcast_to(col, (T_pad, F)))
    mask_block = jnp.tile(mask, (TB, 1))              # (TB*T_pad, F_pad)

    # ---- FC padded to lane-dense dims; padded logits biased to -1e30 ----
    fcw_p = jnp.zeros((F_pad, C_pad), jnp.float32).at[:F_total, :C].set(fc_w)
    fcw_p = fcw_p.astype(compute_dtype)
    fcb_p = jnp.full((1, C_pad), -1e30, jnp.float32).at[:, :C].set(fc_b)

    kernel = _make_textcnn_kernel(TB, T_pad, F_pad)

    out = pl.pallas_call(
        kernel,
        out_shape=jax.ShapeDtypeStruct((B_pad, C_pad), jnp.float32),
        grid_spec=pltpu.PrefetchScalarGridSpec(
            num_scalar_prefetch=0,
            grid=(B_pad // TB,),
            in_specs=[
                pl.BlockSpec((TB * T_pad, K), lambda b: (b, 0)),      # patches
                pl.BlockSpec((K, F_pad), lambda b: (0, 0)),           # fused conv W
                pl.BlockSpec((1, F_pad), lambda b: (0, 0)),           # fused conv b
                pl.BlockSpec((TB * T_pad, F_pad), lambda b: (0, 0)),  # validity mask
                pl.BlockSpec((F_pad, C_pad), lambda b: (0, 0)),       # fc W (padded)
                pl.BlockSpec((1, C_pad), lambda b: (0, 0)),           # fc b (padded)
            ],
            out_specs=pl.BlockSpec((TB, C_pad), lambda b: (b, 0)),
        ),
        compiler_params=pltpu.CompilerParams(
            dimension_semantics=("parallel",)),
    )(patches, w_flat, b_flat, mask_block, fcw_p, fcb_p)
    return out[:B, :C]                                                # (B, C)


def reference_forward(tokens, emb_table, conv_ws, conv_bs, fc_w, fc_b):
    """Pure-JAX f32 reference matching the PyTorch semantics."""
    emb = emb_table[tokens]                                  # (B,S,D)
    S = emb.shape[1]
    pooled = []
    for w, bias in zip(conv_ws, conv_bs):
        k = w.shape[0]
        T = S - k + 1
        conv = sum(jnp.einsum('btd,df->btf', emb[:, i:i + T, :], w[i])
                   for i in range(k)) + bias                 # (B,T,F)
        conv = jnp.maximum(conv, 0.0)
        pooled.append(jnp.max(conv, axis=1))                 # (B,F)
    cat = jnp.concatenate(pooled, axis=1)                    # (B,3F)
    logits = cat @ fc_w + fc_b
    return jax.nn.softmax(logits, axis=1)


if __name__ == "__main__":
    # Small, deterministic configuration.
    vocab_size = 50
    embed_dim = 32
    num_classes = 4
    num_filters = 16
    batch = 16            # 2 "parallel" grid steps of 8 rows -> both v7x TCs get work
    seq = 16

    key = jax.random.PRNGKey(0)
    keys = jax.random.split(key, 2 + 2 * len(KERNEL_SIZES) + 2)

    emb_table = 0.1 * jax.random.normal(keys[0], (vocab_size, embed_dim), jnp.float32)
    tokens = jax.random.randint(keys[1], (batch, seq), 0, vocab_size)

    conv_ws, conv_bs = [], []
    for i, k in enumerate(KERNEL_SIZES):
        conv_ws.append(0.1 * jax.random.normal(keys[2 + 2 * i],
                                               (k, embed_dim, num_filters), jnp.float32))
        conv_bs.append(0.1 * jax.random.normal(keys[3 + 2 * i],
                                               (1, num_filters), jnp.float32))

    fc_w = 0.1 * jax.random.normal(keys[-2],
                                   (len(KERNEL_SIZES) * num_filters, num_classes), jnp.float32)
    fc_b = 0.1 * jax.random.normal(keys[-1], (1, num_classes), jnp.float32)

    # TODO(synk): the embedding gather (and wrapper-side im2col) stays in XLA
    # glue; at production B/S/D it should move in-kernel via scalar-prefetched
    # token ids + an Element-index BlockSpec (or manual DMA gather) to remove
    # the (B,S,D) HBM round-trip.
    emb = emb_table[tokens]                                  # (B, S, D) f32

    out = textcnn_forward(emb, conv_ws, conv_bs, fc_w, fc_b)
    out = jax.block_until_ready(out)

    ref = reference_forward(tokens, emb_table, conv_ws, conv_bs, fc_w, fc_b)
    assert out.shape == (batch, num_classes)
    assert jnp.allclose(out, ref, atol=2e-2, rtol=2e-2), \
        float(jnp.max(jnp.abs(out - ref)))

    print("KERNEL_OK")
</pallas_src>

<mosaic_0001>
module attributes {stable_mosaic.version = 11 : i64} {
  func.func @kernel(%arg0: i32, %arg1: memref<128x160xbf16, #tpu.memory_space<vmem>>, %arg2: memref<160x128xbf16, #tpu.memory_space<vmem>>, %arg3: memref<1x128xf32, #tpu.memory_space<vmem>>, %arg4: memref<128x128xf32, #tpu.memory_space<vmem>>, %arg5: memref<128x128xbf16, #tpu.memory_space<vmem>>, %arg6: memref<1x128xf32, #tpu.memory_space<vmem>>, %arg7: memref<8x128xf32, #tpu.memory_space<vmem>>) attributes {dimension_semantics = [#tpu.dimension_semantics<parallel>], iteration_bounds = array<i64: 2>, scalar_prefetch = 0 : i64, scratch_operands = 0 : i64, tpu.core_type = #tpu.core_type<tc>, window_params = [{transform_indices = @transform_0, window_bounds = array<i64: 128, 160>}, {pipeline_mode = #tpu.pipeline_mode<synchronous>, transform_indices = @transform_1, window_bounds = array<i64: 160, 128>}, {pipeline_mode = #tpu.pipeline_mode<synchronous>, transform_indices = @transform_2, window_bounds = array<i64: 1, 128>}, {pipeline_mode = #tpu.pipeline_mode<synchronous>, transform_indices = @transform_3, window_bounds = array<i64: 128, 128>}, {pipeline_mode = #tpu.pipeline_mode<synchronous>, transform_indices = @transform_4, window_bounds = array<i64: 128, 128>}, {pipeline_mode = #tpu.pipeline_mode<synchronous>, transform_indices = @transform_5, window_bounds = array<i64: 1, 128>}, {transform_indices = @transform_6, window_bounds = array<i64: 8, 128>}]} {
    %c0 = arith.constant 0 : index
    %c0_0 = arith.constant 0 : index
    %0 = vector.load %arg1[%c0, %c0_0] : memref<128x160xbf16, #tpu.memory_space<vmem>>, vector<128x160xbf16>
    %c0_1 = arith.constant 0 : index
    %c0_2 = arith.constant 0 : index
    %1 = vector.load %arg2[%c0_1, %c0_2] : memref<160x128xbf16, #tpu.memory_space<vmem>>, vector<160x128xbf16>
    %cst = arith.constant dense<0.000000e+00> : vector<128x128xf32>
    %2 = tpu.matmul %0, %1, %cst {dimension_numbers = #tpu.dot_dimension_numbers<[1], [0], [0], [1], [0, 0, 1, 1], [], []>} : vector<128x160xbf16>, vector<160x128xbf16>, vector<128x128xf32> -> vector<128x128xf32>
    %c0_3 = arith.constant 0 : index
    %c0_4 = arith.constant 0 : index
    %3 = vector.load %arg3[%c0_3, %c0_4] : memref<1x128xf32, #tpu.memory_space<vmem>>, vector<1x128xf32>
    %4 = vector.broadcast %3 : vector<1x128xf32> to vector<128x128xf32>
    %5 = arith.addf %2, %4 : vector<128x128xf32>
    %cst_5 = arith.constant 0.000000e+00 : f32
    %6 = vector.broadcast %cst_5 : f32 to vector<128x128xf32>
    %7 = arith.maximumf %5, %6 : vector<128x128xf32>
    %c0_6 = arith.constant 0 : index
    %c0_7 = arith.constant 0 : index
    %8 = vector.load %arg4[%c0_6, %c0_7] : memref<128x128xf32, #tpu.memory_space<vmem>>, vector<128x128xf32>
    %9 = arith.mulf %7, %8 : vector<128x128xf32>
    %10 = vector.shape_cast %9 : vector<128x128xf32> to vector<8x16x128xf32>
    %cst_8 = arith.constant dense<0xFF800000> : vector<8x128xf32>
    %11 = vector.multi_reduction <maximumf>, %10, %cst_8 [1] : vector<8x16x128xf32> to vector<8x128xf32>
    %12 = arith.truncf %11 : vector<8x128xf32> to vector<8x128xbf16>
    %c0_9 = arith.constant 0 : index
    %c0_10 = arith.constant 0 : index
    %13 = vector.load %arg5[%c0_9, %c0_10] : memref<128x128xbf16, #tpu.memory_space<vmem>>, vector<128x128xbf16>
    %cst_11 = arith.constant dense<0.000000e+00> : vector<8x128xf32>
    %14 = tpu.matmul %12, %13, %cst_11 {dimension_numbers = #tpu.dot_dimension_numbers<[1], [0], [0], [1], [0, 0, 1, 1], [], []>} : vector<8x128xbf16>, vector<128x128xbf16>, vector<8x128xf32> -> vector<8x128xf32>
    %c0_12 = arith.constant 0 : index
    %c0_13 = arith.constant 0 : index
    %15 = vector.load %arg6[%c0_12, %c0_13] : memref<1x128xf32, #tpu.memory_space<vmem>>, vector<1x128xf32>
    %16 = vector.broadcast %15 : vector<1x128xf32> to vector<8x128xf32>
    %17 = arith.addf %14, %16 : vector<8x128xf32>
    %cst_14 = arith.constant dense<0xFF800000> : vector<8xf32>
    %18 = vector.multi_reduction <maximumf>, %17, %cst_14 [1] : vector<8x128xf32> to vector<8xf32>
    %19 = vector.shape_cast %18 : vector<8xf32> to vector<8x1xf32>
    %20 = vector.broadcast %19 : vector<8x1xf32> to vector<8x128xf32>
    %21 = arith.subf %17, %20 : vector<8x128xf32>
    %22 = math.exp %21 : vector<8x128xf32>
    %cst_15 = arith.constant dense<0.000000e+00> : vector<8xf32>
    %23 = vector.multi_reduction <add>, %22, %cst_15 [1] : vector<8x128xf32> to vector<8xf32>
    %24 = vector.shape_cast %23 : vector<8xf32> to vector<8x1xf32>
    %25 = tpu.reciprocal %24 {approx = true} : vector<8x1xf32> -> vector<8x1xf32>
    %26 = vector.broadcast %25 : vector<8x1xf32> to vector<8x128xf32>
    %27 = arith.mulf %22, %26 : vector<8x128xf32>
    %c0_16 = arith.constant 0 : index
    %c0_17 = arith.constant 0 : index
    %28 = vector.load %arg7[%c0_16, %c0_17] : memref<8x128xf32, #tpu.memory_space<vmem>>, vector<8x128xf32>
    tpu.vector_store %arg7[%c0_16, %c0_17], %27 {strides = array<i32>} : memref<8x128xf32, #tpu.memory_space<vmem>>, vector<8x128xf32>,
    return
  }
  func.func @transform_0(%arg0: i32) -> (i32, i32) {
    %c0_i32 = arith.constant 0 : i32
    %c0_i32_0 = arith.constant 0 : i32
    return %arg0, %c0_i32 : i32, i32
  }
  func.func @transform_1(%arg0: i32) -> (i32, i32) {
    %c0_i32 = arith.constant 0 : i32
    %c0_i32_0 = arith.constant 0 : i32
    %c0_i32_1 = arith.constant 0 : i32
    return %c0_i32, %c0_i32_0 : i32, i32
  }
  func.func @transform_2(%arg0: i32) -> (i32, i32) {
    %c0_i32 = arith.constant 0 : i32
    %c0_i32_0 = arith.constant 0 : i32
    %c0_i32_1 = arith.constant 0 : i32
    return %c0_i32, %c0_i32_0 : i32, i32
  }
  func.func @transform_3(%arg0: i32) -> (i32, i32) {
    %c0_i32 = arith.constant 0 : i32
    %c0_i32_0 = arith.constant 0 : i32
    %c0_i32_1 = arith.constant 0 : i32
    return %c0_i32, %c0_i32_0 : i32, i32
  }
  func.func @transform_4(%arg0: i32) -> (i32, i32) {
    %c0_i32 = arith.constant 0 : i32
    %c0_i32_0 = arith.constant 0 : i32
    %c0_i32_1 = arith.constant 0 : i32
    return %c0_i32, %c0_i32_0 : i32, i32
  }
  func.func @transform_5(%arg0: i32) -> (i32, i32) {
    %c0_i32 = arith.constant 0 : i32
    %c0_i32_0 = arith.constant 0 : i32
    %c0_i32_1 = arith.constant 0 : i32
    return %c0_i32, %c0_i32_0 : i32, i32
  }
  func.func @transform_6(%arg0: i32) -> (i32, i32) {
    %c0_i32 = arith.constant 0 : i32
    %c0_i32_0 = arith.constant 0 : i32
    return %arg0, %c0_i32 : i32, i32
  }
}

</mosaic_0001>

<llo_original>
// kernel: tpu_custom_call.1
$region0: #{tpu_custom_call.1}
  #allocation0 [shape = 'u32[]', space=smem, size = 0x4, offset = 0x4, fixed_abs, tag = 'smem constant byte address 0x4 - core index']
  #allocation1 [shape = 'u32[144,128]{1,0:T(1,128)}', space=vmem, size = 0x12000, scoped, tag = 'internal scratch']
  %s0 = inlined_call_operand.vmem [shape: bf16[256,160], index: 0, kind: input, shape index: {}]
  %s1 = inlined_call_operand.vmem [shape: bf16[160,128], index: 1, kind: input, shape index: {}]
  %s2 = inlined_call_operand.vmem [shape: f32[1,128], index: 2, kind: input, shape index: {}]
  %s3 = inlined_call_operand.vmem [shape: f32[128,128], index: 3, kind: input, shape index: {}]
  %s4 = inlined_call_operand.vmem [shape: bf16[128,128], index: 4, kind: input, shape index: {}]
  %s5 = inlined_call_operand.vmem [shape: f32[1,128], index: 5, kind: input, shape index: {}]
  %s6 = inlined_call_operand.hbm [shape: f32[16,128], index: 6, kind: output, shape index: {}]
  %s7 = sld [smem:[#allocation0]]
  $region57: #{tpu_custom_call.1} parent=0
    _
  %s9 = ssub.s32 1, %s7
  %s10 = scalar_select 0, %s9, %s7
  $region1: #{tpu_custom_call.1} parent=0
    #allocation2 [shape = 'u8[8192]{0}', space=vmem, size = 0x2000, scoped, tag = 'output window, operand 0']
    #allocation3 [shape = 's32[2]{0}', space=sflag, size = 0x8, scoped, tag = 'scoped memory for tpu_custom_call.1']
    %11 = vsyncpa [#allocation3], 0
    %s12 = scalar_lea.sflag [#allocation3], 1
    %13 = vsyncpa %s12, 0
    loop: start=0, step=1, limit=4
    $region2: #{tpu_custom_call.1} parent=1 // loop_pre_header
      _
    $region3: #{tpu_custom_call.1} parent=1 // loop_header
      %s15 = sphi 0, %s19
      %p16 = scmp.ge.s32.totalorder %s15, 4
      %s25 = sphi 0, %s27
      %s28 = sphi 0, %s25
      %s29 = sphi 0, %s28
      %s45 = sphi 0, %s29
      %s49 = sphi 0, %s49
      %s51 = sphi 0, %s49
      %s52 = sphi 0, %s51
      %s66 = sphi 0, %s52
      %s70 = sphi 0, %s70
      %s72 = sphi 0, %s70
      %s73 = sphi 0, %s72
      %s87 = sphi 0, %s73
      %s91 = sphi 0, %s91
      %s93 = sphi 0, %s91
      %s94 = sphi 0, %s93
      %s108 = sphi 0, %s94
      %s112 = sphi 0, %s112
      %s114 = sphi 0, %s112
      %s115 = sphi 0, %s114
      %s129 = sphi 0, %s115
      %s133 = sphi 0, %s133
      %s135 = sphi 0, %s133
      %s136 = sphi 0, %s135
      %s150 = sphi 0, %s136
      %s156 = sphi 0, %s158
      %s159 = sphi 0, %s156
      %s160 = sphi 0, %s159
      %s176 = sphi 0, %s160
    $region4: #{tpu_custom_call.1} parent=1 // loop_header_branch
      %18 = sbr.rel (%p16) target = $region8
    $region5: #{tpu_custom_call.1} parent=1 // loop_body
      %s20 = ssub.s32 %s15, 1
      %s21 = ssub.s32 %s15, 2
      %s22 = sadd.s32 %s15, 1
      %s23 = ssub.s32 %s15, %s22
      %p24 = scmp.eq.s32.totalorder %s23, 0
      %s26 = sadd.s32 %s25, 1
      %s27 = scalar_select %p24, %s25, %s26
      %p30 = pneg %p24
      %p31 = scmp.eq.s32.totalorder %s15, 1
      %p32 = por %p30, %p31
      %p33 = scmp.ne.s32.totalorder %s25, %s28
      %p34 = scmp.eq.s32.totalorder %s15, 0
      %p35 = por %p33, %p34
      %p36 = scmp.ne.s32.totalorder %s25, %s28
      %p37 = scmp.eq.s32.totalorder %s20, 1
      %p38 = por %p36, %p37
      %p39 = scmp.ne.s32.totalorder %s28, %s29
      %p40 = scmp.eq.s32.totalorder %s20, 0
      %p41 = por %p39, %p40
      %p42 = scmp.ne.s32.totalorder %s28, %s29
      %p43 = scmp.eq.s32.totalorder %s21, 1
      %p44 = por %p42, %p43
      %p46 = scmp.ne.s32.totalorder %s29, %s45
      %p47 = scmp.eq.s32.totalorder %s21, 0
      %p48 = por %p46, %p47
      %s50 = sadd.s32 %s49, 1
      %p53 = scmp.eq.s32.totalorder %s15, 1
      %p54 = scmp.ne.s32.totalorder %s49, %s51
      %p55 = scmp.eq.s32.totalorder %s15, 0
      %p56 = por %p54, %p55
      %p57 = scmp.ne.s32.totalorder %s49, %s51
      %p58 = scmp.eq.s32.totalorder %s20, 1
      %p59 = por %p57, %p58
      %p60 = scmp.ne.s32.totalorder %s51, %s52
      %p61 = scmp.eq.s32.totalorder %s20, 0
      %p62 = por %p60, %p61
      %p63 = scmp.ne.s32.totalorder %s51, %s52
      %p64 = scmp.eq.s32.totalorder %s21, 1
      %p65 = por %p63, %p64
      %p67 = scmp.ne.s32.totalorder %s52, %s66
      %p68 = scmp.eq.s32.totalorder %s21, 0
      %p69 = por %p67, %p68
      %s71 = sadd.s32 %s70, 1
      %p74 = scmp.eq.s32.totalorder %s15, 1
      %p75 = scmp.ne.s32.totalorder %s70, %s72
      %p76 = scmp.eq.s32.totalorder %s15, 0
      %p77 = por %p75, %p76
      %p78 = scmp.ne.s32.totalorder %s70, %s72
      %p79 = scmp.eq.s32.totalorder %s20, 1
      %p80 = por %p78, %p79
      %p81 = scmp.ne.s32.totalorder %s72, %s73
      %p82 = scmp.eq.s32.totalorder %s20, 0
      %p83 = por %p81, %p82
      %p84 = scmp.ne.s32.totalorder %s72, %s73
      %p85 = scmp.eq.s32.totalorder %s21, 1
      %p86 = por %p84, %p85
      %p88 = scmp.ne.s32.totalorder %s73, %s87
      %p89 = scmp.eq.s32.totalorder %s21, 0
      %p90 = por %p88, %p89
      %s92 = sadd.s32 %s91, 1
      %p95 = scmp.eq.s32.totalorder %s15, 1
      %p96 = scmp.ne.s32.totalorder %s91, %s93
      %p97 = scmp.eq.s32.totalorder %s15, 0
      %p98 = por %p96, %p97
      %p99 = scmp.ne.s32.totalorder %s91, %s93
      %p100 = scmp.eq.s32.totalorder %s20, 1
      %p101 = por %p99, %p100
      %p102 = scmp.ne.s32.totalorder %s93, %s94
      %p103 = scmp.eq.s32.totalorder %s20, 0
      %p104 = por %p102, %p103
      %p105 = scmp.ne.s32.totalorder %s93, %s94
      %p106 = scmp.eq.s32.totalorder %s21, 1
      %p107 = por %p105, %p106
      %p109 = scmp.ne.s32.totalorder %s94, %s108
      %p110 = scmp.eq.s32.totalorder %s21, 0
      %p111 = por %p109, %p110
      %s113 = sadd.s32 %s112, 1
      %p116 = scmp.eq.s32.totalorder %s15, 1
      %p117 = scmp.ne.s32.totalorder %s112, %s114
      %p118 = scmp.eq.s32.totalorder %s15, 0
      %p119 = por %p117, %p118
      %p120 = scmp.ne.s32.totalorder %s112, %s114
      %p121 = scmp.eq.s32.totalorder %s20, 1
      %p122 = por %p120, %p121
      %p123 = scmp.ne.s32.totalorder %s114, %s115
      %p124 = scmp.eq.s32.totalorder %s20, 0
      %p125 = por %p123, %p124
      %p126 = scmp.ne.s32.totalorder %s114, %s115
      %p127 = scmp.eq.s32.totalorder %s21, 1
      %p128 = por %p126, %p127
      %p130 = scmp.ne.s32.totalorder %s115, %s129
      %p131 = scmp.eq.s32.totalorder %s21, 0
      %p132 = por %p130, %p131
      %s134 = sadd.s32 %s133, 1
      %p137 = scmp.eq.s32.totalorder %s15, 1
      %p138 = scmp.ne.s32.totalorder %s133, %s135
      %p139 = scmp.eq.s32.totalorder %s15, 0
      %p140 = por %p138, %p139
      %p141 = scmp.ne.s32.totalorder %s133, %s135
      %p142 = scmp.eq.s32.totalorder %s20, 1
      %p143 = por %p141, %p142
      %p144 = scmp.ne.s32.totalorder %s135, %s136
      %p145 = scmp.eq.s32.totalorder %s20, 0
      %p146 = por %p144, %p145
      %p147 = scmp.ne.s32.totalorder %s135, %s136
      %p148 = scmp.eq.s32.totalorder %s21, 1
      %p149 = por %p147, %p148
      %p151 = scmp.ne.s32.totalorder %s136, %s150
      %p152 = scmp.eq.s32.totalorder %s21, 0
      %p153 = por %p151, %p152
      %s154 = ssub.s32 %s15, %s22
      %p155 = scmp.eq.s32.totalorder %s154, 0
      %s157 = sadd.s32 %s156, 1
      %s158 = scalar_select %p155, %s156, %s157
      %p161 = pneg %p155
      %p162 = scmp.eq.s32.totalorder %s15, 1
      %p163 = por %p161, %p162
      %p164 = scmp.ne.s32.totalorder %s156, %s159
      %p165 = scmp.eq.s32.totalorder %s15, 0
      %p166 = por %p164, %p165
      %p167 = scmp.ne.s32.totalorder %s156, %s159
      %p168 = scmp.eq.s32.totalorder %s20, 1
      %p169 = por %p167, %p168
      %p170 = scmp.ne.s32.totalorder %s159, %s160
      %p171 = scmp.eq.s32.totalorder %s20, 0
      %p172 = por %p170, %p171
      %p173 = scmp.ne.s32.totalorder %s159, %s160
      %p174 = scmp.eq.s32.totalorder %s21, 1
      %p175 = por %p173, %p174
      %p177 = scmp.ne.s32.totalorder %s160, %s176
      %p178 = scmp.eq.s32.totalorder %s21, 0
      %p179 = por %p177, %p178
      %p180 = scmp.le.s32.totalorder 1, %s15
      %p181 = scmp.lt.s32.totalorder %s15, 3
      %p182 = pnand %p180, %p181
      %p183 = pneg %p182
      // Predicated region
      $region9: #{tpu_custom_call.1} parent=5 // pred_check
        _
      $region10: #{tpu_custom_call.1} parent=5 // pred_check_branch
        %185 = sbr.rel (%p182) target = $region12
      $region11: #{tpu_custom_call.1} parent=5 // pred_region
        %s186 = ssub.s32 %s15, 1
        // Predicated region
        $region13: #{tpu_custom_call.1} parent=11 // pred_check
          %p187 = pneg %p62
        $region14: #{tpu_custom_call.1} parent=11 // pred_check_branch
          %189 = sbr.rel (%p187) target = $region16
        $region15: #{tpu_custom_call.1} parent=11 // pred_region
          _
        $region16: #{tpu_custom_call.1} parent=11 // pred_fallthru
          _
        // Predicated region
        $region17: #{tpu_custom_call.1} parent=11 // pred_check
          %p190 = pneg %p83
        $region18: #{tpu_custom_call.1} parent=11 // pred_check_branch
          %192 = sbr.rel (%p190) target = $region20
        $region19: #{tpu_custom_call.1} parent=11 // pred_region
          _
        $region20: #{tpu_custom_call.1} parent=11 // pred_fallthru
          _
        // Predicated region
        $region21: #{tpu_custom_call.1} parent=11 // pred_check
          %p193 = pneg %p104
        $region22: #{tpu_custom_call.1} parent=11 // pred_check_branch
          %195 = sbr.rel (%p193) target = $region24
        $region23: #{tpu_custom_call.1} parent=11 // pred_region
          _
        $region24: #{tpu_custom_call.1} parent=11 // pred_fallthru
          _
        // Predicated region
        $region25: #{tpu_custom_call.1} parent=11 // pred_check
          %p196 = pneg %p125
        $region26: #{tpu_custom_call.1} parent=11 // pred_check_branch
          %198 = sbr.rel (%p196) target = $region28
        $region27: #{tpu_custom_call.1} parent=11 // pred_region
          _
        $region28: #{tpu_custom_call.1} parent=11 // pred_fallthru
          _
        // Predicated region
        $region29: #{tpu_custom_call.1} parent=11 // pred_check
          %p199 = pneg %p146
        $region30: #{tpu_custom_call.1} parent=11 // pred_check_branch
          %201 = sbr.rel (%p199) target = $region32
        $region31: #{tpu_custom_call.1} parent=11 // pred_region
          _
        $region32: #{tpu_custom_call.1} parent=11 // pred_fallthru
          _
      $region12: #{tpu_custom_call.1} parent=5 // pred_fallthru
        _
      %p202 = scmp.lt.s32.totalorder %s15, 2
      // Predicated region
      $region33: #{tpu_custom_call.1} parent=5 // pred_check
        %p203 = pneg %p202
      $region34: #{tpu_custom_call.1} parent=5 // pred_check_branch
        %205 = sbr.rel (%p203) target = $region36
      $region35: #{tpu_custom_call.1} parent=5 // pred_region
        // Predicated region
        $region37: #{tpu_custom_call.1} parent=35 // pred_check
          %p206 = pneg %p35
        $region38: #{tpu_custom_call.1} parent=35 // pred_check_branch
          %208 = sbr.rel (%p206) target = $region40
        $region39: #{tpu_custom_call.1} parent=35 // pred_region
          %s209 = smul.u32 16, %s15
          %p210 = scmp.lt.s32.totalorder %s209, 31
          %s211 = scalar_select %p210, %s209, 31
          %s212 = smul.addr %s211, 2
          %s213 = smul.addr %s212, 4
          %s214 = scalar_lea.vmem %s0, %s213
          %s215 = smul.u32 16, %s15
        $region40: #{tpu_custom_call.1} parent=35 // pred_fallthru
          _
      $region36: #{tpu_custom_call.1} parent=5 // pred_fallthru
        _
      %p216 = scmp.le.s32.totalorder 1, %s15
      %p217 = scmp.lt.s32.totalorder %s15, 3
      %p218 = pnand %p216, %p217
      %p219 = pneg %p218
      // Predicated region
      $region41: #{tpu_custom_call.1} parent=5 // pred_check
        _
      $region42: #{tpu_custom_call.1} parent=5 // pred_check_branch
        %221 = sbr.rel (%p218) target = $region44
      $region43: #{tpu_custom_call.1} parent=5 // pred_region
        %s222 = ssub.s32 %s15, 1
        %s223 = smul.u32 16, %s20
        %p224 = scmp.lt.s32.totalorder %s223, 31
        %s225 = scalar_select %p224, %s223, 31
        %s226 = smul.addr %s225, 2
        %s227 = smul.addr %s226, 4
        %s228 = scalar_lea.vmem %s0, %s227
        %p229 = pneg %p41
        %p230 = pneg %p38
        %p231 = pneg %p62
        %p232 = pneg %p59
        %p233 = pneg %p83
        %p234 = pneg %p80
        %p235 = pneg %p104
        %p236 = pneg %p101
        %p237 = pneg %p125
        %p238 = pneg %p122
        %p239 = pneg %p146
        %p240 = pneg %p143
        %p241 = pneg %p172
        %p242 = pneg %p169
        %s243 = sand.u32 %s159, 1
        %s244 = scalar_lea.sflag [#allocation3], %s243
        %s245 = sand.u32 %s159, 1
        %s246 = smul.addr %s245, 8
        %s247 = scalar_lea.vmem [#allocation2], %s246
        %s248 = smul.u32 16, %s20
        %p249 = scmp.lt.s32.totalorder %s248, 31
        %s250 = scalar_select %p249, %s248, 31
        %s251 = smul.addr %s250, 2
        %s252 = smul.addr %s251, 4
        %s253 = scalar_lea.vmem %s0, %s252
        %s254 = smul.u32 16, %s20
        %v256 = vld [vmem:[%s253] sm:$0xff]
        %v257 = vld [vmem:[%s253 + $0x8] sm:$0xff]
        %v258 = vld [vmem:[%s253 + $0x10] sm:$0xff]
        %v259 = vld [vmem:[%s253 + $0x18] sm:$0xff]
        %v260 = vld [vmem:[%s253 + $0x20] sm:$0xff]
        %v261 = vld [vmem:[%s253 + $0x28] sm:$0xff]
        %v262 = vld [vmem:[%s253 + $0x30] sm:$0xff]
        %v263 = vld [vmem:[%s253 + $0x38] sm:$0xff]
        %v264 = vld [vmem:[%s253 + $0x40] sm:$0xff]
        %v265 = vld [vmem:[%s253 + $0x48] sm:$0xff]
        %v266 = vld [vmem:[%s253 + $0x50] sm:$0xff]
        %v267 = vld [vmem:[%s253 + $0x58] sm:$0xff]
        %v268 = vld [vmem:[%s253 + $0x60] sm:$0xff]
        %v269 = vld [vmem:[%s253 + $0x68] sm:$0xff]
        %v270 = vld [vmem:[%s253 + $0x70] sm:$0xff]
        %v271 = vld [vmem:[%s253 + $0x78] sm:$0xff]
        %v272 = vld [vmem:[%s1] sm:$0xf]
        %v273 = vld [vmem:[%s1 + $0x4] sm:$0xf]
        %v274 = vld [vmem:[%s1 + $0x8] sm:$0xf]
        %v275 = vld [vmem:[%s1 + $0xc] sm:$0xf]
        %v276 = vld [vmem:[%s1 + $0x10] sm:$0xf]
        %v277 = vld [vmem:[%s1 + $0x14] sm:$0xf]
        %v278 = vld [vmem:[%s1 + $0x18] sm:$0xf]
        %v279 = vld [vmem:[%s1 + $0x1c] sm:$0xf]
        %v280 = vld [vmem:[%s1 + $0x20] sm:$0xf]
        %v281 = vld [vmem:[%s1 + $0x24] sm:$0xf]
        %v282 = vld [vmem:[%s1 + $0x28] sm:$0xf]
        %v283 = vld [vmem:[%s1 + $0x2c] sm:$0xf]
        %v284 = vld [vmem:[%s1 + $0x30] sm:$0xf]
        %v285 = vld [vmem:[%s1 + $0x34] sm:$0xf]
        %v286 = vld [vmem:[%s1 + $0x38] sm:$0xf]
        %v287 = vld [vmem:[%s1 + $0x3c] sm:$0xf]
        %v288 = vld [vmem:[%s1 + $0x40] sm:$0xf]
        %v289 = vld [vmem:[%s1 + $0x44] sm:$0xf]
        %v290 = vld [vmem:[%s1 + $0x48] sm:$0xf]
        %v291 = vld [vmem:[%s1 + $0x4c] sm:$0xf]
        %v292 = vld [vmem:[%s2] sm:$0x1]
        %v294 = vlaneseq
        %v295 = vshrl.u32 %v294, 7
        %v296 = vsub.s32 0, %v295
        %v297 = vrot.slane %v292, %v296
        %v315 = vunpack.c.l.b16 %v256
        %v316 = vunpack.c.h.b16 %v256
        %v317 = vunpack.c.l.b16 %v257
        %v318 = vunpack.c.h.b16 %v257
        %v319 = vunpack.c.l.b16 %v258
        %v320 = vunpack.c.h.b16 %v258
        %v321 = vunpack.c.l.b16 %v259
        %v322 = vunpack.c.h.b16 %v259
        %v323 = vunpack.c.l.b16 %v260
        %v324 = vunpack.c.h.b16 %v260
        %v325 = vunpack.c.l.b16 %v261
        %v326 = vunpack.c.h.b16 %v261
        %v327 = vunpack.c.l.b16 %v262
        %v328 = vunpack.c.h.b16 %v262
        %v329 = vunpack.c.l.b16 %v263
        %v330 = vunpack.c.h.b16 %v263
        %v331 = vunpack.c.l.b16 %v264
        %v332 = vunpack.c.h.b16 %v264
        %v333 = vunpack.c.l.b16 %v265
        %v334 = vunpack.c.h.b16 %v265
        %v335 = vunpack.c.l.b16 %v266
        %v336 = vunpack.c.h.b16 %v266
        %v337 = vunpack.c.l.b16 %v267
        %v338 = vunpack.c.h.b16 %v267
        %v339 = vunpack.c.l.b16 %v268
        %v340 = vunpack.c.h.b16 %v268
        %v341 = vunpack.c.l.b16 %v269
        %v342 = vunpack.c.h.b16 %v269
        %v343 = vunpack.c.l.b16 %v270
        %v344 = vunpack.c.h.b16 %v270
        %v345 = vunpack.c.l.b16 %v271
        %v346 = vunpack.c.h.b16 %v271
        %v347 = vpack.c.b16 %v317, %v315
        %v348 = vpack.c.b16 %v318, %v316
        %v349 = vpack.c.b16 %v321, %v319
        %v350 = vpack.c.b16 %v322, %v320
        %v351 = vpack.c.b16 %v325, %v323
        %v352 = vpack.c.b16 %v326, %v324
        %v353 = vpack.c.b16 %v329, %v327
        %v354 = vpack.c.b16 %v330, %v328
        %v355 = vpack.c.b16 %v333, %v331
        %v356 = vpack.c.b16 %v334, %v332
        %v357 = vpack.c.b16 %v337, %v335
        %v358 = vpack.c.b16 %v338, %v336
        %v359 = vpack.c.b16 %v341, %v339
        %v360 = vpack.c.b16 %v342, %v340
        %v361 = vpack.c.b16 %v345, %v343
        %v362 = vpack.c.b16 %v346, %v344
        %v391 = vunpack.c.l.b16 %v272
        %v392 = vunpack.c.l.b16 %v273
        %v393 = vunpack.c.l.b16 %v274
        %v394 = vunpack.c.l.b16 %v275
        %v395 = vunpack.c.l.b16 %v276
        %v396 = vunpack.c.l.b16 %v277
        %v397 = vunpack.c.l.b16 %v278
        %v398 = vunpack.c.l.b16 %v279
        %v399 = vunpack.c.l.b16 %v280
        %v400 = vunpack.c.l.b16 %v281
        %v401 = vunpack.c.l.b16 %v282
        %v402 = vunpack.c.l.b16 %v283
        %v403 = vunpack.c.l.b16 %v284
        %v404 = vunpack.c.l.b16 %v285
        %v405 = vunpack.c.l.b16 %v286
        %v406 = vunpack.c.l.b16 %v287
        %v407 = vunpack.c.l.b16 %v288
        %v408 = vunpack.c.l.b16 %v289
        %v409 = vunpack.c.l.b16 %v290
        %v410 = vunpack.c.l.b16 %v291
        %v411 = vpack.c.b16 %v392, %v391
        %v412 = vpack.c.b16 %v394, %v393
        %v413 = vpack.c.b16 %v396, %v395
        %v414 = vpack.c.b16 %v398, %v397
        %v415 = vpack.c.b16 %v400, %v399
        %v416 = vpack.c.b16 %v402, %v401
        %v417 = vpack.c.b16 %v404, %v403
        %v418 = vpack.c.b16 %v406, %v405
        %v419 = vpack.c.b16 %v408, %v407
        %v420 = vpack.c.b16 %v410, %v409
        %vm431 = vcmask 261120
        %v433 = vsel %vm431, %v348, 0
        %v436 = vsel %vm431, %v350, 0
        %v439 = vsel %vm431, %v352, 0
        %v442 = vsel %vm431, %v354, 0
        %v445 = vsel %vm431, %v356, 0
        %v448 = vsel %vm431, %v358, 0
        %v451 = vsel %vm431, %v360, 0
        %v454 = vsel %vm431, %v362, 0
        %456 = vmatprep.subr.bf16.mxu0 0
        %457 = vmatpush1.bf16.msra.mxu0 %v411
        %458 = vmatprep.subr.bf16.mxu0 0
        %459 = vmatpush1.bf16.msra.mxu0 %v412
        %460 = vmatprep.subr.bf16.mxu0 0
        %461 = vmatpush1.bf16.msra.mxu0 %v413
        %462 = vmatprep.subr.bf16.mxu0 0
        %463 = vmatpush1.bf16.msra.mxu0 %v414
        %464 = vmatprep.subr.bf16.mxu0 0
        %465 = vmatpush1.bf16.msra.mxu0 %v415
        %466 = vmatprep.subr.bf16.mxu0 0
        %467 = vmatpush1.bf16.msra.mxu0 %v416
        %468 = vmatprep.subr.bf16.mxu0 0
        %469 = vmatpush1.bf16.msra.mxu0 %v417
        %470 = vmatprep.subr.bf16.mxu0 0
        %471 = vmatpush1.bf16.msra.mxu0 %v418
        %472 = vmatprep.subr.bf16.mxu0 0
        %473 = vmatpush1.bf16.msra.mxu0 %v419
        %474 = vmatprep.subr.bf16.mxu0 0
        %475 = vmatpush1.bf16.msra.mxu0 %v420
        %476 = vmatprep.subr.bf16.mxu0 0
        %477 = vmatpush1.bf16.msra.mxu0 0
        %478 = vmatprep.subr.bf16.mxu0 0
        %479 = vmatpush1.bf16.msra.mxu0 0
        %480 = vmatprep.subr.bf16.mxu0 0
        %481 = vmatpush1.bf16.msra.mxu0 0
        %482 = vmatprep.subr.bf16.mxu0 0
        %483 = vmatpush1.bf16.msra.mxu0 0
        %484 = vmatprep.subr.bf16.mxu0 0
        %485 = vmatpush1.bf16.msra.mxu0 0
        %486 = vmatprep.subr.bf16.mxu0 0
        %487 = vmatpush1.bf16.msra.mxu0 0
        %488 = vmatprep.mubr.bf16.mxu0 %v433
        %489 = vmatmul.mubr.bf16.gmra.mrb[0].mxu0 %v347
        %v490 = vpop.f32.mrb[0].mxu0
        %v491 = vadd.f32 %v297, %v490
        %v492 = vpop.f32.mrb[0].mxu0
        %v493 = vpop.f32.mrb[0].mxu0
        %v494 = vadd.f32 %v297, %v493
        %v495 = vpop.f32.mrb[0].mxu0
        %496 = vmatprep.mubr.bf16.mxu0 %v436
        %497 = vmatmul.mubr.bf16.gmra.mrb[0].mxu0 %v349
        %v498 = vpop.f32.mrb[0].mxu0
        %v499 = vadd.f32 %v297, %v498
        %v500 = vpop.f32.mrb[0].mxu0
        %v501 = vpop.f32.mrb[0].mxu0
        %v502 = vadd.f32 %v297, %v501
        %v503 = vpop.f32.mrb[0].mxu0
        %504 = vmatprep.mubr.bf16.mxu0 %v439
        %505 = vmatmul.mubr.bf16.gmra.mrb[0].mxu0 %v351
        %v506 = vpop.f32.mrb[0].mxu0
        %v507 = vadd.f32 %v297, %v506
        %v508 = vpop.f32.mrb[0].mxu0
        %v509 = vpop.f32.mrb[0].mxu0
        %v510 = vadd.f32 %v297, %v509
        %v511 = vpop.f32.mrb[0].mxu0
        %512 = vmatprep.mubr.bf16.mxu0 %v442
        %513 = vmatmul.mubr.bf16.gmra.mrb[0].mxu0 %v353
        %v514 = vpop.f32.mrb[0].mxu0
        %v515 = vadd.f32 %v297, %v514
        %v516 = vpop.f32.mrb[0].mxu0
        %v517 = vpop.f32.mrb[0].mxu0
        %v518 = vadd.f32 %v297, %v517
        %v519 = vpop.f32.mrb[0].mxu0
        %520 = vmatprep.mubr.bf16.mxu0 %v445
        %521 = vmatmul.mubr.bf16.gmra.mrb[0].mxu0 %v355
        %v522 = vpop.f32.mrb[0].mxu0
        %v523 = vadd.f32 %v297, %v522
        %v524 = vpop.f32.mrb[0].mxu0
        %v525 = vpop.f32.mrb[0].mxu0
        %v526 = vadd.f32 %v297, %v525
        %v527 = vpop.f32.mrb[0].mxu0
        %528 = vmatprep.mubr.bf16.mxu0 %v448
        %529 = vmatmul.mubr.bf16.gmra.mrb[0].mxu0 %v357
        %v530 = vpop.f32.mrb[0].mxu0
        %v531 = vadd.f32 %v297, %v530
        %v532 = vpop.f32.mrb[0].mxu0
        %v533 = vpop.f32.mrb[0].mxu0
        %v534 = vadd.f32 %v297, %v533
        %v535 = vpop.f32.mrb[0].mxu0
        %536 = vmatprep.mubr.bf16.mxu0 %v451
        %537 = vmatmul.mubr.bf16.gmra.mrb[0].mxu0 %v359
        %v538 = vpop.f32.mrb[0].mxu0
        %v539 = vadd.f32 %v297, %v538
        %v540 = vpop.f32.mrb[0].mxu0
        %v541 = vpop.f32.mrb[0].mxu0
        %v542 = vadd.f32 %v297, %v541
        %v543 = vpop.f32.mrb[0].mxu0
        %544 = vmatprep.mubr.bf16.mxu0 %v454
        %545 = vmatmul.mubr.bf16.gmra.mrb[0].mxu0 %v361
        %v546 = vpop.f32.mrb[0].mxu0
        %v547 = vadd.f32 %v297, %v546
        %v548 = vpop.f32.mrb[0].mxu0
        %v549 = vpop.f32.mrb[0].mxu0
        %v550 = vadd.f32 %v297, %v549
        %v551 = vpop.f32.mrb[0].mxu0
        %552 = vdwg.mxu0
        %v553 = vmax.f32 %v491, 0.0
        %v554 = vmax.f32 %v494, 0.0
        %v555 = vmax.f32 %v499, 0.0
        %v556 = vmax.f32 %v502, 0.0
        %v557 = vmax.f32 %v507, 0.0
        %v558 = vmax.f32 %v510, 0.0
        %v559 = vmax.f32 %v515, 0.0
        %v560 = vmax.f32 %v518, 0.0
        %v561 = vmax.f32 %v523, 0.0
        %v562 = vmax.f32 %v526, 0.0
        %v563 = vmax.f32 %v531, 0.0
        %v564 = vmax.f32 %v534, 0.0
        %v565 = vmax.f32 %v539, 0.0
        %v566 = vmax.f32 %v542, 0.0
        %v567 = vmax.f32 %v547, 0.0
        %v568 = vmax.f32 %v550, 0.0
        %v569 = vld [vmem:[%s3] sm:$0xff]
        %v570 = vld [vmem:[%s3 + $0x8] sm:$0xff]
        %v571 = vld [vmem:[%s3 + $0x10] sm:$0xff]
        %v572 = vld [vmem:[%s3 + $0x18] sm:$0xff]
        %v573 = vld [vmem:[%s3 + $0x20] sm:$0xff]
        %v574 = vld [vmem:[%s3 + $0x28] sm:$0xff]
        %v575 = vld [vmem:[%s3 + $0x30] sm:$0xff]
        %v576 = vld [vmem:[%s3 + $0x38] sm:$0xff]
        %v577 = vld [vmem:[%s3 + $0x40] sm:$0xff]
        %v578 = vld [vmem:[%s3 + $0x48] sm:$0xff]
        %v579 = vld [vmem:[%s3 + $0x50] sm:$0xff]
        %v580 = vld [vmem:[%s3 + $0x58] sm:$0xff]
        %v581 = vld [vmem:[%s3 + $0x60] sm:$0xff]
        %v582 = vld [vmem:[%s3 + $0x68] sm:$0xff]
        %v583 = vld [vmem:[%s3 + $0x70] sm:$0xff]
        %v584 = vld [vmem:[%s3 + $0x78] sm:$0xff]
        %v585 = vmul.f32 %v553, %v569
        %v586 = vmul.f32 %v554, %v570
        %v587 = vmul.f32 %v555, %v571
        %v588 = vmul.f32 %v556, %v572
        %v589 = vmul.f32 %v557, %v573
        %v590 = vmul.f32 %v558, %v574
        %v591 = vmul.f32 %v559, %v575
        %v592 = vmul.f32 %v560, %v576
        %v593 = vmul.f32 %v561, %v577
        %v594 = vmul.f32 %v562, %v578
        %v595 = vmul.f32 %v563, %v579
        %v596 = vmul.f32 %v564, %v580
        %v597 = vmul.f32 %v565, %v581
        %v598 = vmul.f32 %v566, %v582
        %v599 = vmul.f32 %v567, %v583
        %v600 = vmul.f32 %v568, %v584
        %v601 = vmax.f32 %v585, %v586
        %v602 = vrot.slane %v601, 4
        %v603 = vmax.f32 %v601, %v602
        %v604 = vrot.slane %v603, 2
        %v605 = vmax.f32 %v603, %v604
        %v606 = vrot.slane %v605, 1
        %v607 = vmax.f32 %v605, %v606
        %v608 = vmax.f32 %v587, %v588
        %v609 = vrot.slane %v608, 4
        %v610 = vmax.f32 %v608, %v609
        %v611 = vrot.slane %v610, 2
        %v612 = vmax.f32 %v610, %v611
        %v613 = vrot.slane %v612, 1
        %v614 = vmax.f32 %v612, %v613
        %v615 = vmax.f32 %v589, %v590
        %v616 = vrot.slane %v615, 4
        %v617 = vmax.f32 %v615, %v616
        %v618 = vrot.slane %v617, 2
        %v619 = vmax.f32 %v617, %v618
        %v620 = vrot.slane %v619, 1
        %v621 = vmax.f32 %v619, %v620
        %v622 = vmax.f32 %v591, %v592
        %v623 = vrot.slane %v622, 4
        %v624 = vmax.f32 %v622, %v623
        %v625 = vrot.slane %v624, 2
        %v626 = vmax.f32 %v624, %v625
        %v627 = vrot.slane %v626, 1
        %v628 = vmax.f32 %v626, %v627
        %v629 = vmax.f32 %v593, %v594
        %v630 = vrot.slane %v629, 4
        %v631 = vmax.f32 %v629, %v630
        %v632 = vrot.slane %v631, 2
        %v633 = vmax.f32 %v631, %v632
        %v634 = vrot.slane %v633, 1
        %v635 = vmax.f32 %v633, %v634
        %v636 = vmax.f32 %v595, %v596
        %v637 = vrot.slane %v636, 4
        %v638 = vmax.f32 %v636, %v637
        %v639 = vrot.slane %v638, 2
        %v640 = vmax.f32 %v638, %v639
        %v641 = vrot.slane %v640, 1
        %v642 = vmax.f32 %v640, %v641
        %v643 = vmax.f32 %v597, %v598
        %v644 = vrot.slane %v643, 4
        %v645 = vmax.f32 %v643, %v644
        %v646 = vrot.slane %v645, 2
        %v647 = vmax.f32 %v645, %v646
        %v648 = vrot.slane %v647, 1
        %v649 = vmax.f32 %v647, %v648
        %v650 = vmax.f32 %v599, %v600
        %v651 = vrot.slane %v650, 4
        %v652 = vmax.f32 %v650, %v651
        %v653 = vrot.slane %v652, 2
        %v654 = vmax.f32 %v652, %v653
        %v655 = vrot.slane %v654, 1
        %v656 = vmax.f32 %v654, %v655
        %v657 = vpack.c.bf16 %v607, %v607
        %v658 = vpack.c.bf16 %v614, %v614
        %v659 = vpack.c.bf16 %v621, %v621
        %v660 = vpack.c.bf16 %v628, %v628
        %v661 = vpack.c.bf16 %v635, %v635
        %v662 = vpack.c.bf16 %v642, %v642
        %v663 = vpack.c.bf16 %v649, %v649
        %v664 = vpack.c.bf16 %v656, %v656
        %v665 = vld [vmem:[%s4] sm:$0xf]
        %v666 = vld [vmem:[%s4 + $0x4] sm:$0xf]
        %v667 = vld [vmem:[%s4 + $0x8] sm:$0xf]
        %v668 = vld [vmem:[%s4 + $0xc] sm:$0xf]
        %v669 = vld [vmem:[%s4 + $0x10] sm:$0xf]
        %v670 = vld [vmem:[%s4 + $0x14] sm:$0xf]
        %v671 = vld [vmem:[%s4 + $0x18] sm:$0xf]
        %v672 = vld [vmem:[%s4 + $0x1c] sm:$0xf]
        %v673 = vld [vmem:[%s4 + $0x20] sm:$0xf]
        %v674 = vld [vmem:[%s4 + $0x24] sm:$0xf]
        %v675 = vld [vmem:[%s4 + $0x28] sm:$0xf]
        %v676 = vld [vmem:[%s4 + $0x2c] sm:$0xf]
        %v677 = vld [vmem:[%s4 + $0x30] sm:$0xf]
        %v678 = vld [vmem:[%s4 + $0x34] sm:$0xf]
        %v679 = vld [vmem:[%s4 + $0x38] sm:$0xf]
        %v680 = vld [vmem:[%s4 + $0x3c] sm:$0xf]
        %v681 = vld [vmem:[%s5] sm:$0x1]
        %v683 = vlaneseq
        %v684 = vshrl.u32 %v683, 7
        %v685 = vsub.s32 0, %v684
        %v686 = vrot.slane %v681, %v685
        %v696 = vunpack.c.l.b16 %v657
        %v697 = vunpack.c.l.b16 %v658
        %v698 = vunpack.c.l.b16 %v659
        %v699 = vunpack.c.l.b16 %v660
        %v700 = vunpack.c.l.b16 %v661
        %v701 = vunpack.c.l.b16 %v662
        %v702 = vunpack.c.l.b16 %v663
        %v703 = vunpack.c.l.b16 %v664
        %vm704 = vcmask 1041409
        %v705 = vsel %vm704, %v697, %v696
        %vm706 = vcmask 1042434
        %v707 = vsel %vm706, %v698, %v705
        %vm708 = vcmask 1043459
        %v709 = vsel %vm708, %v699, %v707
        %vm710 = vcmask 1044484
        %v711 = vsel %vm710, %v700, %v709
        %vm712 = vcmask 1045509
        %v713 = vsel %vm712, %v701, %v711
        %vm714 = vcmask 1046534
        %v715 = vsel %vm714, %v702, %v713
        %vm716 = vcmask 1047559
        %v717 = vsel %vm716, %v703, %v715
        %v718 = vpack.c.b16 %v717, %v717
        %v736 = vunpack.c.l.b16 %v665
        %v737 = vunpack.c.l.b16 %v666
        %v738 = vunpack.c.l.b16 %v667
        %v739 = vunpack.c.l.b16 %v668
        %v740 = vunpack.c.l.b16 %v669
        %v741 = vunpack.c.l.b16 %v670
        %v742 = vunpack.c.l.b16 %v671
        %v743 = vunpack.c.l.b16 %v672
        %v744 = vunpack.c.l.b16 %v673
        %v745 = vunpack.c.l.b16 %v674
        %v746 = vunpack.c.l.b16 %v675
        %v747 = vunpack.c.l.b16 %v676
        %v748 = vunpack.c.l.b16 %v677
        %v749 = vunpack.c.l.b16 %v678
        %v750 = vunpack.c.l.b16 %v679
        %v751 = vunpack.c.l.b16 %v680
        %v752 = vpack.c.b16 %v737, %v736
        %v753 = vpack.c.b16 %v739, %v738
        %v754 = vpack.c.b16 %v741, %v740
        %v755 = vpack.c.b16 %v743, %v742
        %v756 = vpack.c.b16 %v745, %v744
        %v757 = vpack.c.b16 %v747, %v746
        %v758 = vpack.c.b16 %v749, %v748
        %v759 = vpack.c.b16 %v751, %v750
        %768 = vmatprep.subr.bf16.mxu0 0
        %769 = vmatpush1.bf16.msra.mxu0 %v752
        %770 = vmatprep.subr.bf16.mxu0 0
        %771 = vmatpush1.bf16.msra.mxu0 %v753
        %772 = vmatprep.subr.bf16.mxu0 0
        %773 = vmatpush1.bf16.msra.mxu0 %v754
        %774 = vmatprep.subr.bf16.mxu0 0
        %775 = vmatpush1.bf16.msra.mxu0 %v755
        %776 = vmatprep.subr.bf16.mxu0 0
        %777 = vmatpush1.bf16.msra.mxu0 %v756
        %778 = vmatprep.subr.bf16.mxu0 0
        %779 = vmatpush1.bf16.msra.mxu0 %v757
        %780 = vmatprep.subr.bf16.mxu0 0
        %781 = vmatpush1.bf16.msra.mxu0 %v758
        %782 = vmatprep.subr.bf16.mxu0 0
        %783 = vmatpush1.bf16.msra.mxu0 %v759
        %784 = vmatprep.subr.bf16.mxu0 0
        %785 = vmatpush1.bf16.msra.mxu0 0
        %786 = vmatprep.subr.bf16.mxu0 0
        %787 = vmatpush1.bf16.msra.mxu0 0
        %788 = vmatprep.subr.bf16.mxu0 0
        %789 = vmatpush1.bf16.msra.mxu0 0
        %790 = vmatprep.subr.bf16.mxu0 0
        %791 = vmatpush1.bf16.msra.mxu0 0
        %792 = vmatprep.subr.bf16.mxu0 0
        %793 = vmatpush1.bf16.msra.mxu0 0
        %794 = vmatprep.subr.bf16.mxu0 0
        %795 = vmatpush1.bf16.msra.mxu0 0
        %796 = vmatprep.subr.bf16.mxu0 0
        %797 = vmatpush1.bf16.msra.mxu0 0
        %798 = vmatprep.subr.bf16.mxu0 0
        %799 = vmatpush1.bf16.msra.mxu0 0
        %800 = vmatprep.mubr.bf16.mxu0 0
        %801 = vmatmul.mubr.bf16.gmra.mrb[0].mxu0 %v718
        %v802 = vpop.f32.mrb[0].mxu0
        %v803 = vadd.f32 %v686, %v802
        %v804 = vpop.f32.mrb[0].mxu0
        %v805 = vpop.f32.mrb[0].mxu0
        %v806 = vpop.f32.mrb[0].mxu0
        %807 = vdwg.mxu0
        %808 = vmax.xlane.f32.xlu0 %v803
        %v809 = vpop.xlane.xlu0 %808
        %v810 = vsub.f32 %v803, %v809
        %v811 = vmul.f32 %v810, 1.442695
        %v812 = vpow.pop %v811
        %813 = vadd.xlane.f32.xlu0 %v812
        %v814 = vpop.xlane.xlu0 %813
        %v815 = vrcp.pop %v814
        %v816 = vmul.f32 %v812, %v815
        %817 = vst [vmem:[%s247] sm:$0xff] %v816
        %s818 = sand.u32 %s159, 1
        %s819 = scalar_lea.sflag [#allocation3], %s818
        %s820 = sand.u32 %s159, 1
        %s821 = smul.addr %s820, 8
        %s822 = scalar_lea.vmem [#allocation2], %s821
        // Predicated region
        $region45: #{tpu_custom_call.1} parent=43 // pred_check
          %p823 = pneg %p169
        $region46: #{tpu_custom_call.1} parent=43 // pred_check_branch
          %825 = sbr.rel (%p823) target = $region48
        $region47: #{tpu_custom_call.1} parent=43 // pred_region
          %s827 = ssub.s32 128, 128
          %828 = vsyncadd %s819, %s827
          %s829 = smul.addr %s20, 128
          %s830 = scalar_lea.hbm %s6, %s829
          %s832 = sshll.u32 %s822, 4
          %s833 = int_to_ptr.vmem [resolvable:$true] %s832
          %835 = dma.vmem_to_hbm [thread:$0]  %s833, 128, %s830, %s819
        $region48: #{tpu_custom_call.1} parent=43 // pred_fallthru
          _
      $region44: #{tpu_custom_call.1} parent=5 // pred_fallthru
        _
      %p836 = scmp.le.s32.totalorder 2, %s15
      // Predicated region
      $region49: #{tpu_custom_call.1} parent=5 // pred_check
        %p837 = pneg %p836
      $region50: #{tpu_custom_call.1} parent=5 // pred_check_branch
        %839 = sbr.rel (%p837) target = $region52
      $region51: #{tpu_custom_call.1} parent=5 // pred_region
        %s840 = ssub.s32 %s15, 2
        // Predicated region
        $region53: #{tpu_custom_call.1} parent=51 // pred_check
          %p841 = pneg %p175
        $region54: #{tpu_custom_call.1} parent=51 // pred_check_branch
          %843 = sbr.rel (%p841) target = $region56
        $region55: #{tpu_custom_call.1} parent=51 // pred_region
          %s844 = sand.u32 %s160, 1
          %s845 = scalar_lea.sflag [#allocation3], %s844
          %s846 = sand.u32 %s160, 1
          %s847 = smul.addr %s846, 8
          %s848 = scalar_lea.vmem [#allocation2], %s847
          %849 = dma.done %s845, 128
        $region56: #{tpu_custom_call.1} parent=51 // pred_fallthru
          _
      $region52: #{tpu_custom_call.1} parent=5 // pred_fallthru
        _
    $region6: #{tpu_custom_call.1} parent=1 // loop_footer
      %s19 = sadd.s32 1, %s15
    $region7: #{tpu_custom_call.1} parent=1 // loop_footer_branch
      %14 = sbr.rel target = $region3
    $region8: #{tpu_custom_call.1} parent=1 // loop_exit
      _
    %850 = vsyncpa [#allocation3], 1
    %s851 = scalar_lea.sflag [#allocation3], 1
    %852 = vsyncpa %s851, 1

</llo_original>
